<compile_context>
chip_gen: v5e
topology: v5e:2x2
jax: 0.10.0
libtpu: 0.0.40
codegen_flags: <defaults>
</compile_context>

<pallas_src>
import jax
import jax.numpy as jnp
from jax.experimental import pallas as pl
from jax.experimental.pallas import tpu as pltpu


_SUB = 8      # sublanes per dynamic-gather call (one f32 vreg)
_LANE = 128   # lanes per vreg
_NC = 256     # N-chunk for the one-hot fallback (one 256-wide MXU pass of rows)


def _round_up(x, m):
    return -(-x // m) * m


_VMEM_LIMIT = None


def _scoped_vmem_limit():
    """Generation-gated scoped-VMEM limit: half of physical, capped at 64 MiB.

    v5e/v6e have 128 MiB VMEM per TensorCore -> 64 MiB scoped; v7x has only
    64 MiB -> 32 MiB scoped.  Falls back conservatively if the query fails.
    """
    global _VMEM_LIMIT
    if _VMEM_LIMIT is None:
        try:
            cap = int(pltpu.get_tpu_info().vmem_capacity_bytes)
        except Exception:
            cap = 64 * 1024 * 1024
        _VMEM_LIMIT = max(min(cap // 2, 64 * 1024 * 1024), 16 * 1024 * 1024)
    return _VMEM_LIMIT


# --------------------------------------------------------------------------
# 1-step softmax kernel (hoisted out of the per-K-tile loop).
# --------------------------------------------------------------------------
def _softmax_kernel(alpha_ref, probs_ref):
    # alpha_ref / probs_ref: (1, N_pad) f32; padded alpha lanes hold a huge
    # negative value, so their exp is exactly 0 and padded probs come out 0.
    a = alpha_ref[...]
    m = jnp.max(a, axis=-1, keepdims=True)
    e = jnp.exp(a - m)
    denom = jnp.sum(e, axis=-1, keepdims=True)
    probs_ref[...] = e * pl.reciprocal(denom)        # exact reciprocal (1 use)


def _softmax_probs_pallas(alpha, n_pad):
    n = alpha.shape[0]
    neg = jnp.finfo(jnp.float32).min
    a_pad = jnp.full((1, n_pad), neg, dtype=jnp.float32)
    a_pad = a_pad.at[0, :n].set(alpha.astype(jnp.float32))
    return pl.pallas_call(
        _softmax_kernel,
        out_shape=jax.ShapeDtypeStruct((1, n_pad), jnp.float32),
        grid=(1,),
        in_specs=[pl.BlockSpec((1, n_pad), lambda i: (0, 0))],
        out_specs=pl.BlockSpec((1, n_pad), lambda i: (0, 0)),
        compiler_params=pltpu.CompilerParams(vmem_limit_bytes=_scoped_vmem_limit()),
    )(a_pad)


# --------------------------------------------------------------------------
# Fast path (N <= 128): dynamic lane gather, K laid out as (rows, 128).
# --------------------------------------------------------------------------
def _lane_gather_kernel(probs_ref, idx_ref, out_ref):
    # probs_ref: (1, 128)   f32  softmax(alpha) padded to 128 lanes (resident
    #                            across the whole K grid: constant index_map).
    # idx_ref  : (Rt, 128)  i32  lane-dense index tile.
    # out_ref  : (Rt, 128)  f32  lane-dense gathered probabilities.
    rt = idx_ref.shape[0]
    # Hoisted sublane broadcast (JAX does not CSE broadcast_in_dim in loops).
    probs_b = jnp.broadcast_to(probs_ref[...], (_SUB, _LANE))
    for g in range(rt // _SUB):                       # static, <= 8 iterations
        lo = g * _SUB
        idx8 = idx_ref[lo:lo + _SUB, :]               # (8, 128) i32
        # Cross-lane dynamic gather on one vreg: out[s, l] = probs[idx[s, l]].
        out_ref[lo:lo + _SUB, :] = jnp.take_along_axis(
            probs_b, idx8, axis=1, mode="promise_in_bounds")


def _gather_lane_pallas(probs128, idx_flat):
    """probs128: (1, 128) f32 (positions >= N are never addressed); idx_flat: (K,) i32."""
    k = idx_flat.shape[0]
    r = pl.cdiv(k, _LANE)
    r8 = _round_up(r, _SUB)
    if r8 <= _SUB:
        rt = _SUB                                     # single small tile
    else:
        # >=2 "parallel" grid steps (v7x dual TensorCore), tiles capped at
        # 64 rows = 8192 indices (32 KiB in + 32 KiB out) to amortize the
        # ~0.35us/step overhead while staying well inside VMEM.
        rt = min(64, max(_SUB, _round_up(pl.cdiv(r8, 2), _SUB)))
    r_pad = _round_up(r8, rt)
    k_pad = r_pad * _LANE
    # Pad with index 0 (always valid); padded outputs are sliced off below.
    idx2d = jnp.pad(idx_flat, (0, k_pad - k)).reshape(r_pad, _LANE)

    out = pl.pallas_call(
        _lane_gather_kernel,
        out_shape=jax.ShapeDtypeStruct((r_pad, _LANE), jnp.float32),
        grid_spec=pltpu.PrefetchScalarGridSpec(
            num_scalar_prefetch=0,
            grid=(r_pad // rt,),
            in_specs=[
                pl.BlockSpec((1, _LANE), lambda i: (0, 0)),   # probs: resident
                pl.BlockSpec((rt, _LANE), lambda i: (i, 0)),  # idx tile
            ],
            out_specs=pl.BlockSpec((rt, _LANE), lambda i: (i, 0)),
        ),
        compiler_params=pltpu.CompilerParams(
            dimension_semantics=("parallel",),
            vmem_limit_bytes=_scoped_vmem_limit(),
        ),
    )(probs128, idx2d)
    return out.reshape(k_pad)[:k]


_LANE_GATHER_OK = None


def _lane_gather_available():
    """One-time feature probe of Mosaic's dynamic lane-gather lowering.

    If jnp.take_along_axis does not lower (or mis-gathers) on this toolchain,
    fall back to the chunked one-hot/MXU formulation so we always run clean.
    """
    global _LANE_GATHER_OK
    if _LANE_GATHER_OK is None:
        try:
            probs = jnp.pad(jnp.arange(1.0, 9.0, dtype=jnp.float32), (0, 120))
            probs = probs.reshape(1, _LANE)
            test_idx = jnp.array([3, 0, 7, 5, 1, 6, 2, 4], dtype=jnp.int32)
            got = jax.block_until_ready(_gather_lane_pallas(probs, test_idx))
            want = probs[0, test_idx]
            _LANE_GATHER_OK = bool(jnp.allclose(got, want))
        except Exception:
            _LANE_GATHER_OK = False
    return _LANE_GATHER_OK


# --------------------------------------------------------------------------
# Fallback path (N > 128, or no gather lowering): N-chunked one-hot on the MXU.
# --------------------------------------------------------------------------
def _onehot_gather_kernel(probs_ref, idx_ref, out_ref):
    # probs_ref: (1, N_pad) f32  (padded probs are exactly 0 -> contribute nothing)
    # idx_ref  : (1, kt)    i32
    # out_ref  : (1, kt)    f32
    n_pad = probs_ref.shape[-1]
    kt = idx_ref.shape[-1]
    idx = idx_ref[...]
    acc = jnp.zeros((1, kt), jnp.float32)
    # Chunk the contraction over N so only a (256, kt) slab is ever live:
    # VMEM/vreg footprint is independent of N (no (N, kt) materialization).
    # The one-hot stays f32: chunking already bounds the slab, and an exact
    # f32 contraction preserves the f32 softmax numerics (a bf16 RHS would
    # need a mixed-dtype dot for no real gain at this slab size).
    # TODO(synk): for very large N switch this static unroll to a fori_loop.
    for c in range(n_pad // _NC):
        base = c * _NC
        rows = base + jax.lax.broadcasted_iota(jnp.int32, (_NC, kt), 0)
        onehot = jnp.where(rows == idx, 1.0, 0.0).astype(jnp.float32)
        acc = acc + jax.lax.dot_general(
            probs_ref[:, base:base + _NC], onehot,
            dimension_numbers=(((1,), (0,)), ((), ())),
            preferred_element_type=jnp.float32,
        )
    out_ref[...] = acc


def _gather_onehot_pallas(probs_pad, idx_flat):
    n_pad = probs_pad.shape[-1]
    k = idx_flat.shape[0]
    k_pad = _round_up(k, _NC)
    kt = min(2048, k_pad)                             # 256-aligned lane-dense tiles
    if k_pad >= 2 * _NC:
        # >=2 grid steps so both v7x TensorCores engage.
        kt = min(kt, _round_up(pl.cdiv(k_pad, 2), _NC))
    k_pad = _round_up(k_pad, kt)
    idx_p = jnp.pad(idx_flat, (0, k_pad - k)).reshape(1, k_pad)

    out = pl.pallas_call(
        _onehot_gather_kernel,
        out_shape=jax.ShapeDtypeStruct((1, k_pad), jnp.float32),
        grid_spec=pltpu.PrefetchScalarGridSpec(
            num_scalar_prefetch=0,
            grid=(k_pad // kt,),
            in_specs=[
                pl.BlockSpec((1, n_pad), lambda i: (0, 0)),   # probs: resident
                pl.BlockSpec((1, kt), lambda i: (0, i)),      # idx: lane-dense tile
            ],
            out_specs=pl.BlockSpec((1, kt), lambda i: (0, i)),
        ),
        compiler_params=pltpu.CompilerParams(
            dimension_semantics=("parallel",),
            vmem_limit_bytes=_scoped_vmem_limit(),
        ),
    )(probs_pad, idx_p)
    return out.reshape(k_pad)[:k]


# --------------------------------------------------------------------------
# Public wrappers.
# --------------------------------------------------------------------------
def attention_params_pallas(alpha, idx):
    """softmax(alpha)[idx] via Pallas: hoisted 1-step softmax + streaming gather."""
    n = alpha.shape[0]
    idx_flat = jnp.asarray(idx, dtype=jnp.int32).reshape(-1)
    if n <= _LANE and _lane_gather_available():
        probs = _softmax_probs_pallas(alpha, _LANE)           # (1, 128), pads = 0
        return _gather_lane_pallas(probs, idx_flat)
    n_pad = _round_up(n, _NC)
    probs = _softmax_probs_pallas(alpha, n_pad)               # (1, N_pad), pads = 0
    return _gather_onehot_pallas(probs, idx_flat)


def attention_params_forward(alpha, idx, *, min_pallas_k=1024, force_pallas=False):
    """Matches attention_params.forward: softmax(alpha, dim=-1)[idx], idx shape kept.

    The Pallas gather streams ~8 B per index, so the XLA-fallback crossover is
    on K alone (per-index cost is O(1), independent of N).
    """
    # TODO(synk): out-of-range / negative idx is not range-checked like PyTorch
    # indexing (no negative wraparound, OOB gather is undefined/0).
    idx = jnp.asarray(idx, dtype=jnp.int32)
    idx_shape = idx.shape
    idx_flat = idx.reshape(-1)
    k = idx_flat.shape[0]
    if force_pallas or k >= min_pallas_k:
        out = attention_params_pallas(alpha, idx_flat)
    else:
        out = jax.nn.softmax(alpha.astype(jnp.float32), axis=-1)[idx_flat]
    return out.reshape(idx_shape)


if __name__ == "__main__":
    key = jax.random.PRNGKey(0)

    # --- Test 1: the module's toy sizes (N=8, K=4); force the Pallas path. ---
    n1, k1 = 8, 4
    alpha1 = jnp.ones((n1,), dtype=jnp.float32) / n1          # the module's init
    key, sub = jax.random.split(key)
    idx1 = jax.random.randint(sub, (k1,), 0, n1, dtype=jnp.int32)
    out1 = jax.block_until_ready(attention_params_forward(alpha1, idx1, force_pallas=True))
    ref1 = jax.nn.softmax(alpha1, axis=-1)[idx1]
    assert out1.shape == (k1,)
    assert jnp.allclose(out1, ref1, atol=1e-6), (out1, ref1)

    # --- Test 2: N=32, 2-D idx with K=2560 -> gather path with a >=2-step
    #     "parallel" K grid (both v7x TensorCores engage); exercises dispatch. ---
    n2 = 32
    key, sub = jax.random.split(key)
    alpha2 = jax.random.normal(sub, (n2,), dtype=jnp.float32)
    key, sub = jax.random.split(key)
    idx2 = jax.random.randint(sub, (4, 640), 0, n2, dtype=jnp.int32)
    out2 = jax.block_until_ready(attention_params_forward(alpha2, idx2))
    ref2 = jax.nn.softmax(alpha2, axis=-1)[idx2]
    assert out2.shape == idx2.shape
    assert jnp.allclose(out2, ref2, atol=1e-6), (out2, ref2)

    # --- Test 3: N=200 (>128) exercises the N-chunked one-hot/MXU fallback. ---
    n3, k3 = 200, 600
    key, sub = jax.random.split(key)
    alpha3 = jax.random.normal(sub, (n3,), dtype=jnp.float32)
    key, sub = jax.random.split(key)
    idx3 = jax.random.randint(sub, (k3,), 0, n3, dtype=jnp.int32)
    out3 = jax.block_until_ready(attention_params_forward(alpha3, idx3, force_pallas=True))
    ref3 = jax.nn.softmax(alpha3, axis=-1)[idx3]
    assert out3.shape == (k3,)
    # MXU f32 contraction path: allow a slightly looser (still tight) tolerance.
    assert jnp.allclose(out3, ref3, atol=1e-5), (out3, ref3)

    print("KERNEL_OK")
</pallas_src>

<mosaic_0001>
module attributes {stable_mosaic.version = 11 : i64} {
  func.func @_lane_gather_kernel(%arg0: i32, %arg1: memref<1x128xf32, #tpu.memory_space<vmem>>, %arg2: memref<8x128xi32, #tpu.memory_space<vmem>>, %arg3: memref<8x128xf32, #tpu.memory_space<vmem>>) attributes {dimension_semantics = [#tpu.dimension_semantics<parallel>], iteration_bounds = array<i64: 1>, scalar_prefetch = 0 : i64, scratch_operands = 0 : i64, tpu.core_type = #tpu.core_type<tc>, window_params = [{pipeline_mode = #tpu.pipeline_mode<synchronous>, transform_indices = @transform_0, window_bounds = array<i64: 1, 128>}, {transform_indices = @transform_1, window_bounds = array<i64: 8, 128>}, {transform_indices = @transform_2, window_bounds = array<i64: 8, 128>}]} {
    %c0 = arith.constant 0 : index
    %c0_0 = arith.constant 0 : index
    %0 = vector.load %arg1[%c0, %c0_0] : memref<1x128xf32, #tpu.memory_space<vmem>>, vector<1x128xf32>
    %1 = vector.shape_cast %0 : vector<1x128xf32> to vector<1x128xf32>
    %2 = vector.broadcast %1 : vector<1x128xf32> to vector<8x128xf32>
    %c0_1 = arith.constant 0 : index
    %c0_2 = arith.constant 0 : index
    %3 = vector.load %arg2[%c0_1, %c0_2] : memref<8x128xi32, #tpu.memory_space<vmem>>, vector<8x128xi32>
    %4 = vector.shape_cast %3 : vector<8x128xi32> to vector<8x128x1xi32>
    %5 = vector.shape_cast %4 : vector<8x128x1xi32> to vector<8x128xi32>
    %6 = tpu.dynamic_gather %2[%5] in [1] : vector<8x128xf32>, vector<8x128xi32> -> vector<8x128xf32>
    %c0_3 = arith.constant 0 : index
    %c0_4 = arith.constant 0 : index
    %7 = vector.load %arg3[%c0_3, %c0_4] : memref<8x128xf32, #tpu.memory_space<vmem>>, vector<8x128xf32>
    tpu.vector_store %arg3[%c0_3, %c0_4], %6 {strides = array<i32>} : memref<8x128xf32, #tpu.memory_space<vmem>>, vector<8x128xf32>,
    return
  }
  func.func @transform_0(%arg0: i32) -> (i32, i32) {
    %c0_i32 = arith.constant 0 : i32
    %c0_i32_0 = arith.constant 0 : i32
    %c0_i32_1 = arith.constant 0 : i32
    return %c0_i32, %c0_i32_0 : i32, i32
  }
  func.func @transform_1(%arg0: i32) -> (i32, i32) {
    %c0_i32 = arith.constant 0 : i32
    %c0_i32_0 = arith.constant 0 : i32
    return %arg0, %c0_i32 : i32, i32
  }
  func.func @transform_2(%arg0: i32) -> (i32, i32) {
    %c0_i32 = arith.constant 0 : i32
    %c0_i32_0 = arith.constant 0 : i32
    return %arg0, %c0_i32 : i32, i32
  }
}

module attributes {stable_mosaic.version = 11 : i64} {
  func.func @_softmax_kernel(%arg0: i32, %arg1: memref<1x256xf32, #tpu.memory_space<vmem>>, %arg2: memref<1x256xf32, #tpu.memory_space<vmem>>) attributes {dimension_semantics = [#tpu.dimension_semantics<arbitrary>], iteration_bounds = array<i64: 1>, scalar_prefetch = 0 : i64, scratch_operands = 0 : i64, tpu.core_type = #tpu.core_type<tc>, window_params = [{pipeline_mode = #tpu.pipeline_mode<synchronous>, transform_indices = @transform_0, window_bounds = array<i64: 1, 256>}, {pipeline_mode = #tpu.pipeline_mode<synchronous>, transform_indices = @transform_1, window_bounds = array<i64: 1, 256>}]} {
    %c0 = arith.constant 0 : index
    %c0_0 = arith.constant 0 : index
    %0 = vector.load %arg1[%c0, %c0_0] : memref<1x256xf32, #tpu.memory_space<vmem>>, vector<1x256xf32>
    %cst = arith.constant dense<0xFF800000> : vector<1xf32>
    %1 = vector.multi_reduction <maximumf>, %0, %cst [1] : vector<1x256xf32> to vector<1xf32>
    %2 = vector.shape_cast %1 : vector<1xf32> to vector<1x1xf32>
    %3 = vector.broadcast %2 : vector<1x1xf32> to vector<1x256xf32>
    %4 = arith.subf %0, %3 : vector<1x256xf32>
    %5 = math.exp %4 : vector<1x256xf32>
    %cst_1 = arith.constant dense<0.000000e+00> : vector<1xf32>
    %6 = vector.multi_reduction <add>, %5, %cst_1 [1] : vector<1x256xf32> to vector<1xf32>
    %7 = vector.shape_cast %6 : vector<1xf32> to vector<1x1xf32>
    %8 = tpu.reciprocal %7 : vector<1x1xf32> -> vector<1x1xf32>
    %9 = vector.broadcast %8 : vector<1x1xf32> to vector<1x256xf32>
    %10 = arith.mulf %5, %9 : vector<1x256xf32>
    %c0_2 = arith.constant 0 : index
    %c0_3 = arith.constant 0 : index
    %11 = vector.load %arg2[%c0_2, %c0_3] : memref<1x256xf32, #tpu.memory_space<vmem>>, vector<1x256xf32>
    tpu.vector_store %arg2[%c0_2, %c0_3], %10 {strides = array<i32>} : memref<1x256xf32, #tpu.memory_space<vmem>>, vector<1x256xf32>,
    return
  }
  func.func @transform_0(%arg0: i32) -> (i32, i32) {
    %c0_i32 = arith.constant 0 : i32
    %c0_i32_0 = arith.constant 0 : i32
    %c0_i32_1 = arith.constant 0 : i32
    return %c0_i32, %c0_i32_0 : i32, i32
  }
  func.func @transform_1(%arg0: i32) -> (i32, i32) {
    %c0_i32 = arith.constant 0 : i32
    %c0_i32_0 = arith.constant 0 : i32
    %c0_i32_1 = arith.constant 0 : i32
    return %c0_i32, %c0_i32_0 : i32, i32
  }
}

</mosaic_0001>

<llo_original>
// kernel: tpu_custom_call.1
$region0: #{tpu_custom_call.1}
  #allocation0 [shape = 'u32[]', space=smem, size = 0x4, offset = 0x4, fixed_abs, tag = 'smem constant byte address 0x4 - core index']
  #allocation1 [shape = 'u32[72,128]{1,0:T(1,128)}', space=vmem, size = 0x9000, scoped, tag = 'internal scratch']
  %s0 = inlined_call_operand.hbm [shape: f32[1,128], index: 0, kind: input, shape index: {}]
  %s1 = inlined_call_operand.hbm [shape: s32[8,128], index: 1, kind: input, shape index: {}]
  %s2 = inlined_call_operand.hbm [shape: f32[8,128], index: 2, kind: output, shape index: {}]
  %s3 = sld [smem:[#allocation0]]
  $region26: #{tpu_custom_call.1} parent=0
    _
  %s5 = ssub.s32 1, %s3
  %s6 = scalar_select 0, %s5, %s3
  $region1: #{tpu_custom_call.1} parent=0
    #allocation2 [shape = 'u8[512]{0}', space=vmem, size = 0x400, scoped, tag = 'input window, operand 0, single buffered']
    #allocation3 [shape = 's32[1]{0}', space=sflag, size = 0x4, scoped, tag = 'scoped memory for tpu_custom_call.1']
    #allocation4 [shape = 's32[1]{0}', space=sflag, size = 0x4, scoped, tag = 'scoped memory for tpu_custom_call.1']
    #allocation5 [shape = 'u8[4096]{0}', space=vmem, size = 0x1000, scoped, tag = 'input window, operand 1, single buffered']
    #allocation6 [shape = 's32[1]{0}', space=sflag, size = 0x4, scoped, tag = 'scoped memory for tpu_custom_call.1']
    #allocation7 [shape = 'u8[4096]{0}', space=vmem, size = 0x1000, scoped, tag = 'output window, operand 0, single buffered']
    %7 = vsyncpa [#allocation3], 0
    %8 = vsyncpa [#allocation6], 0
    %9 = vsyncpa [#allocation4], 0
    // Predicated region
    $region2: #{tpu_custom_call.1} parent=1 // pred_check
      _
    $region3: #{tpu_custom_call.1} parent=1 // pred_check_branch
      %11 = sbr.rel (0) target = $region5
    $region4: #{tpu_custom_call.1} parent=1 // pred_region
      %13 = vsyncadd [#allocation3], 0
      %s15 = sshll.u32 %s0, 4
      %s16 = int_to_ptr.hbm [resolvable:$true] %s15
      %s17 = sshll.u32 [#allocation2], 4
      %s18 = int_to_ptr.vmem [resolvable:$true] %s17
      %20 = dma.hbm_to_vmem [thread:$0]  %s16, 16, %s18, [#allocation3]
    $region5: #{tpu_custom_call.1} parent=1 // pred_fallthru
      _
    // Predicated region
    $region6: #{tpu_custom_call.1} parent=1 // pred_check
      _
    $region7: #{tpu_custom_call.1} parent=1 // pred_check_branch
      %22 = sbr.rel (0) target = $region9
    $region8: #{tpu_custom_call.1} parent=1 // pred_region
      %24 = vsyncadd [#allocation6], 0
      %s26 = sshll.u32 %s1, 4
      %s27 = int_to_ptr.hbm [resolvable:$true] %s26
      %s28 = sshll.u32 [#allocation5], 4
      %s29 = int_to_ptr.vmem [resolvable:$true] %s28
      %31 = dma.hbm_to_vmem [thread:$0]  %s27, 128, %s29, [#allocation6]
    $region9: #{tpu_custom_call.1} parent=1 // pred_fallthru
      _
    // Predicated region
    $region10: #{tpu_custom_call.1} parent=1 // pred_check
      _
    $region11: #{tpu_custom_call.1} parent=1 // pred_check_branch
      %33 = sbr.rel (0) target = $region13
    $region12: #{tpu_custom_call.1} parent=1 // pred_region
      %35 = dma.done [#allocation3], 16
    $region13: #{tpu_custom_call.1} parent=1 // pred_fallthru
      _
    // Predicated region
    $region14: #{tpu_custom_call.1} parent=1 // pred_check
      _
    $region15: #{tpu_custom_call.1} parent=1 // pred_check_branch
      %37 = sbr.rel (0) target = $region17
    $region16: #{tpu_custom_call.1} parent=1 // pred_region
      %39 = dma.done [#allocation6], 128
    $region17: #{tpu_custom_call.1} parent=1 // pred_fallthru
      _
    %v40 = vld [vmem:[#allocation2] sm:$0x1]
    %v42 = vperm.slane %v40, 0
    %v44 = vld [vmem:[#allocation5] sm:$0xff]
    %45 = vset.pattern.permute.xlu0 %v44
    %46 = vperm.xlu0 %45, %v42
    %v47 = vpop.permute.xlu0 %46
    %48 = vst [vmem:[#allocation7] sm:$0xff] %v47
    // Predicated region
    $region18: #{tpu_custom_call.1} parent=1 // pred_check
      _
    $region19: #{tpu_custom_call.1} parent=1 // pred_check_branch
      %50 = sbr.rel (0) target = $region21
    $region20: #{tpu_custom_call.1} parent=1 // pred_region
      %52 = vsyncadd [#allocation4], 0
      %s54 = sshll.u32 [#allocation7], 4
      %s55 = int_to_ptr.vmem [resolvable:$true] %s54
      %s56 = sshll.u32 %s2, 4
      %s57 = int_to_ptr.hbm [resolvable:$true] %s56
      %59 = dma.vmem_to_hbm [thread:$0]  %s55, 128, %s57, [#allocation4]
    $region21: #{tpu_custom_call.1} parent=1 // pred_fallthru
      _
    // Predicated region
    $region22: #{tpu_custom_call.1} parent=1 // pred_check
      _
    $region23: #{tpu_custom_call.1} parent=1 // pred_check_branch
      %61 = sbr.rel (0) target = $region25
    $region24: #{tpu_custom_call.1} parent=1 // pred_region
      %63 = dma.done [#allocation4], 128
    $region25: #{tpu_custom_call.1} parent=1 // pred_fallthru
      _
    %64 = vsyncpa [#allocation3], 1
    %65 = vsyncpa [#allocation6], 1
    %66 = vsyncpa [#allocation4], 1

// kernel: tpu_custom_call.1
$region0: #{tpu_custom_call.1}
  #allocation0 [shape = 'u32[]', space=smem, size = 0x4, offset = 0x4, fixed_abs, tag = 'smem constant byte address 0x4 - core index']
  #allocation1 [shape = 'u32[72,128]{1,0:T(1,128)}', space=vmem, size = 0x9000, scoped, tag = 'internal scratch']
  %s0 = inlined_call_operand.hbm [shape: f32[1,256], index: 0, kind: input, shape index: {}]
  %s1 = inlined_call_operand.hbm [shape: f32[1,256], index: 1, kind: output, shape index: {}]
  %s2 = sld [smem:[#allocation0]]
  $region18: #{tpu_custom_call.1} parent=0
    _
  %s4 = ssub.s32 1, %s2
  %s5 = scalar_select 0, %s4, %s2
  $region1: #{tpu_custom_call.1} parent=0
    #allocation2 [shape = 'u8[1024]{0}', space=vmem, size = 0x400, scoped, tag = 'input window, operand 0, single buffered']
    #allocation3 [shape = 's32[1]{0}', space=sflag, size = 0x4, scoped, tag = 'scoped memory for tpu_custom_call.1']
    #allocation4 [shape = 's32[1]{0}', space=sflag, size = 0x4, scoped, tag = 'scoped memory for tpu_custom_call.1']
    #allocation5 [shape = 'u8[1024]{0}', space=vmem, size = 0x400, scoped, tag = 'output window, operand 0, single buffered']
    %6 = vsyncpa [#allocation3], 0
    %7 = vsyncpa [#allocation4], 0
    // Predicated region
    $region2: #{tpu_custom_call.1} parent=1 // pred_check
      _
    $region3: #{tpu_custom_call.1} parent=1 // pred_check_branch
      %9 = sbr.rel (0) target = $region5
    $region4: #{tpu_custom_call.1} parent=1 // pred_region
      %11 = vsyncadd [#allocation3], 0
      %s13 = sshll.u32 %s0, 4
      %s14 = int_to_ptr.hbm [resolvable:$true] %s13
      %s15 = sshll.u32 [#allocation2], 4
      %s16 = int_to_ptr.vmem [resolvable:$true] %s15
      %18 = dma.hbm_to_vmem [thread:$0]  %s14, 32, %s16, [#allocation3]
    $region5: #{tpu_custom_call.1} parent=1 // pred_fallthru
      _
    // Predicated region
    $region6: #{tpu_custom_call.1} parent=1 // pred_check
      _
    $region7: #{tpu_custom_call.1} parent=1 // pred_check_branch
      %20 = sbr.rel (0) target = $region9
    $region8: #{tpu_custom_call.1} parent=1 // pred_region
      %22 = dma.done [#allocation3], 32
    $region9: #{tpu_custom_call.1} parent=1 // pred_fallthru
      _
    %v23 = vld [vmem:[#allocation2] sm:$0x3]
    %v25 = vperm.slane %v23, 0
    %v26 = vperm.slane %v23, 1
    %vm29 = vcmask 1040384
    %v30 = vsel %vm29, %v25, -inf
    %v31 = vsel %vm29, %v26, -inf
    %v32 = vmax.f32 %v30, %v31
    %33 = vmax.xlane.f32.xlu0 %v32
    %v34 = vpop.xlane.xlu0 %33
    %v36 = vperm.slane %v34, 0
    %v38 = vsub.f32 %v23, %v36
    %v39 = vmul.f32 %v38, 1.442695
    %v40 = vpow.pop %v39
    %v42 = vperm.slane %v40, 0
    %v43 = vperm.slane %v40, 1
    %v46 = vsel %vm29, %v42, 0.0
    %v47 = vsel %vm29, %v43, 0.0
    %v48 = vadd.f32 %v46, %v47
    %49 = vadd.xlane.f32.xlu0 %v48
    %v50 = vpop.xlane.xlu0 %49
    %v51 = vrcp.pop %v50
    %v52 = vmul.f32 %v50, %v51
    %v53 = vsub.f32 1.0, %v52
    %v54 = vmul.f32 %v51, %v53
    %v55 = vadd.f32 %v51, %v54
    %vm56 = vweird.f32 %v50
    %vm57 = vweird.f32 %v51
    %vm58 = vmor %vm56, %vm57
    %v59 = vsel %vm58, %v51, %v55
    %v60 = vand.u32 2147483647, %v50
    %vm61 = vcmp.eq.f32.partialorder %v60, 8.507059e+37
    %v62 = vand.u32 %v50, 2147483648
    %v63 = vor.u32 1.1754944e-38, %v62
    %v64 = vsel %vm61, %v63, %v59
    %v66 = vperm.slane %v64, 0
    %v68 = vmul.f32 %v40, %v66
    %v69 = vlaneseq
    %vm70 = vcmp.ge.s32.totalorder %v69, 0
    %vm71 = vcmp.lt.s32.totalorder %v69, 256
    %vm72 = vmand %vm70, %vm71
    %73 = vst.msk [vmem:[#allocation5] sm:$0x3] %vm72, %v68
    // Predicated region
    $region10: #{tpu_custom_call.1} parent=1 // pred_check
      _
    $region11: #{tpu_custom_call.1} parent=1 // pred_check_branch
      %75 = sbr.rel (0) target = $region13
    $region12: #{tpu_custom_call.1} parent=1 // pred_region
      %77 = vsyncadd [#allocation4], 0
      %s79 = sshll.u32 [#allocation5], 4
      %s80 = int_to_ptr.vmem [resolvable:$true] %s79
      %s81 = sshll.u32 %s1, 4
      %s82 = int_to_ptr.hbm [resolvable:$true] %s81
      %84 = dma.vmem_to_hbm [thread:$0]  %s80, 32, %s82, [#allocation4]
    $region13: #{tpu_custom_call.1} parent=1 // pred_fallthru
      _
    // Predicated region
    $region14: #{tpu_custom_call.1} parent=1 // pred_check
      _
    $region15: #{tpu_custom_call.1} parent=1 // pred_check_branch
      %86 = sbr.rel (0) target = $region17
    $region16: #{tpu_custom_call.1} parent=1 // pred_region
      %88 = dma.done [#allocation4], 32
    $region17: #{tpu_custom_call.1} parent=1 // pred_fallthru
      _
    %89 = vsyncpa [#allocation3], 1
    %90 = vsyncpa [#allocation4], 1

</llo_original>
